<compile_context>
chip_gen: v5e
topology: v5e:2x2
jax: 0.10.0
libtpu: 0.0.40
codegen_flags: <defaults>
</compile_context>

<pallas_src>
import functools

import jax
import jax.numpy as jnp
from jax.experimental import pallas as pl
from jax.experimental.pallas import tpu as pltpu

_LANE = 128
_SUB = 8


def _round_up(x, m):
    return ((x + m - 1) // m) * m


def _dice_stats_kernel(y_pred_ref, y_ref, out_ref, *, num_classes, s_tile, has_pad):
    """Accumulate per-(batch, class) dice statistics for one spatial chunk.

    y_pred_ref: (1, C, s_tile, 128)  logits (native dtype, cast to f32 here)
    y_ref:      (1, s_tile, 128)     int32 class ids (padded pixels == C)
    out_ref:    (1, 3, C, 8, 128)    f32 accumulators:
                [0]=sum(onehot*p), [1]=sum(onehot), [2]=sum(p)
    """
    s = pl.program_id(1)

    @pl.when(s == 0)
    def _init():
        out_ref[...] = jnp.zeros_like(out_ref)

    x = y_pred_ref[0].astype(jnp.float32)          # (C, s_tile, 128)
    yi = y_ref[0]                                   # (s_tile, 128) int32

    # Softmax over the class axis — pure VPU (class axis is leading/non-vreg).
    m = x[0]
    for ci in range(1, num_classes):
        m = jnp.maximum(m, x[ci])
    e = jnp.exp(x - m[None])                        # (C, s_tile, 128)
    den = e[0]
    for ci in range(1, num_classes):
        den = den + e[ci]
    p = e * pl.reciprocal(den)[None]                # (C, s_tile, 128)

    # One-hot mask without materializing an f32 one-hot tensor.
    cls = jax.lax.broadcasted_iota(jnp.int32, x.shape, 0)   # (C, s_tile, 128)
    mask = cls == yi[None]

    inter_t = jnp.where(mask, p, 0.0)               # (C, s_tile, 128)
    onehot_t = jnp.where(mask, 1.0, 0.0)            # (C, s_tile, 128)
    if has_pad:
        # Padded pixels carry label == num_classes, so `mask` is already False
        # there; only sum(p) needs explicit masking.
        valid = yi < num_classes                    # (s_tile, 128)
        p_t = jnp.where(valid[None], p, 0.0)
    else:
        p_t = p

    # Lane/sublane-resident partial reduction: fold s_tile -> 8 sublanes with
    # aligned vreg adds (no cross-lane reduce inside the kernel).
    def fold(a):                                    # (C, s_tile, 128) -> (C, 8, 128)
        r = a[:, 0:_SUB, :]
        for k in range(1, s_tile // _SUB):
            r = r + a[:, k * _SUB:(k + 1) * _SUB, :]
        return r

    out_ref[0, 0] += fold(inter_t)
    out_ref[0, 1] += fold(onehot_t)
    out_ref[0, 2] += fold(p_t)


@functools.partial(jax.jit, static_argnames=("epsilon",))
def dice_loss(y_pred, y, epsilon=1e-07):
    """Pallas TPU implementation of DiceLoss.forward.

    y_pred: (B, C, H, W) float logits (f32 or bf16)
    y:      (B, H, W)    integer class indices
    returns scalar float32 loss = 1 - mean dice coefficient.
    """
    b, c, h, w = y_pred.shape
    hw = h * w

    # Spatial layout: (sublane-chunks, 128 lanes), always >= 8 sublanes packed.
    nsub = _round_up(pl.cdiv(hw, _LANE), _SUB)
    # Tile size: large enough to amortize per-step overhead, small enough to
    # keep the per-step working set far below v7x's 64 MiB VMEM.
    s_max = max(_SUB, min(256, _round_up(4096 // max(c, 1), _SUB)))
    n_s = pl.cdiv(nsub, s_max)
    s_tile = _round_up(pl.cdiv(nsub, n_s), _SUB)
    nsub_pad = n_s * s_tile
    hw_pad = nsub_pad * _LANE
    has_pad = hw_pad != hw

    yp = y_pred.reshape(b, c, hw)                   # keep native dtype (bf16 ok)
    yi = y.reshape(b, hw)
    if yi.dtype != jnp.int32:
        yi = yi.astype(jnp.int32)
    if has_pad:
        yp = jnp.pad(yp, ((0, 0), (0, 0), (0, hw_pad - hw)))
        yi = jnp.pad(yi, ((0, 0), (0, hw_pad - hw)), constant_values=c)
    yp = yp.reshape(b, c, nsub_pad, _LANE)
    yi = yi.reshape(b, nsub_pad, _LANE)

    kernel = functools.partial(
        _dice_stats_kernel, num_classes=c, s_tile=s_tile, has_pad=has_pad)

    n_elem = b * c * hw_pad
    cost = pl.CostEstimate(
        flops=12 * n_elem,
        transcendentals=n_elem,                     # one exp per (b, c, pixel)
        bytes_accessed=(yp.size * yp.dtype.itemsize
                        + yi.size * 4
                        + b * 3 * c * _SUB * _LANE * 4),
    )

    stats = pl.pallas_call(
        kernel,
        out_shape=jax.ShapeDtypeStruct((b, 3, c, _SUB, _LANE), jnp.float32),
        grid_spec=pltpu.PrefetchScalarGridSpec(
            num_scalar_prefetch=0,
            grid=(b, n_s),
            in_specs=[
                pl.BlockSpec((1, c, s_tile, _LANE), lambda bi, si: (bi, 0, si, 0)),
                pl.BlockSpec((1, s_tile, _LANE), lambda bi, si: (bi, si, 0)),
            ],
            out_specs=pl.BlockSpec((1, 3, c, _SUB, _LANE),
                                   lambda bi, si: (bi, 0, 0, 0, 0)),
        ),
        compiler_params=pltpu.CompilerParams(
            dimension_semantics=("parallel", "arbitrary"),
            vmem_limit_bytes=32 * 1024 * 1024,
        ),
        cost_estimate=cost,
    )(yp, yi)

    # Tiny final reduction in plain JAX: cross-lane sum + dice coef + mean.
    stats = jnp.sum(stats, axis=(-2, -1))           # (B, 3, C)
    inter = stats[:, 0]
    onehot_sum = stats[:, 1]
    p_sum = stats[:, 2]
    coef = (2.0 * inter + epsilon) / (onehot_sum + p_sum + epsilon)   # (B, C)
    # dice = (1/C) * sum_c mean_b coef[b, c] == mean over all (b, c)
    return 1.0 - jnp.mean(coef)


def _dice_loss_ref(y_pred, y, epsilon=1e-07):
    """Pure-JAX reference mirroring the PyTorch module."""
    num_classes = y_pred.shape[1]
    y_one_hot = jax.nn.one_hot(y, num_classes, dtype=jnp.float32)      # (B,H,W,C)
    y_one_hot = jnp.transpose(y_one_hot, (0, 3, 1, 2))                 # (B,C,H,W)
    p = jax.nn.softmax(y_pred.astype(jnp.float32), axis=1)
    b = y_pred.shape[0]
    dice = 0.0
    for idx in range(num_classes):
        yf = y_one_hot[:, idx].reshape(b, -1)
        pf = p[:, idx].reshape(b, -1)
        inter = jnp.sum(yf * pf, axis=1)
        union = jnp.sum(yf, axis=1) + jnp.sum(pf, axis=1)
        dice += jnp.mean((2 * inter + epsilon) / (union + epsilon))
    dice /= num_classes
    return 1.0 - dice


if __name__ == "__main__":
    key = jax.random.PRNGKey(0)
    k1, k2 = jax.random.split(key)
    B, C, H, W = 2, 4, 16, 16
    y_pred = jax.random.normal(k1, (B, C, H, W), dtype=jnp.float32)
    y = jax.random.randint(k2, (B, H, W), 0, C, dtype=jnp.int32)

    loss = jax.block_until_ready(dice_loss(y_pred, y))
    ref = jax.block_until_ready(_dice_loss_ref(y_pred, y))
    assert jnp.allclose(loss, ref, atol=1e-5, rtol=1e-5), (loss, ref)
    print("KERNEL_OK")
</pallas_src>

<mosaic_0001>
module attributes {stable_mosaic.version = 11 : i64} {
  func.func @_dice_stats_kernel(%arg0: i32, %arg1: i32, %arg2: memref<1x4x8x128xf32, #tpu.memory_space<vmem>>, %arg3: memref<1x8x128xi32, #tpu.memory_space<vmem>>, %arg4: memref<1x3x4x8x128xf32, #tpu.memory_space<vmem>>) attributes {dimension_semantics = [#tpu.dimension_semantics<parallel>, #tpu.dimension_semantics<arbitrary>], iteration_bounds = array<i64: 2, 1>, scalar_prefetch = 0 : i64, scratch_operands = 0 : i64, tpu.core_type = #tpu.core_type<tc>, window_params = [{transform_indices = @transform_0, window_bounds = array<i64: 1, 4, 8, 128>}, {transform_indices = @transform_1, window_bounds = array<i64: 1, 8, 128>}, {transform_indices = @transform_2, window_bounds = array<i64: 1, 3, 4, 8, 128>}]} {
    %c0_i32 = arith.constant 0 : i32
    %0 = arith.cmpi eq, %arg1, %c0_i32 : i32
    %1 = arith.extui %0 : i1 to i32
    %c0_i32_0 = arith.constant 0 : i32
    %2 = arith.cmpi ne, %1, %c0_i32_0 : i32
    scf.if %2 {
      %cst_38 = arith.constant 0.000000e+00 : f32
      %71 = vector.broadcast %cst_38 : f32 to vector<1x3x4x8x128xf32>
      %c0_39 = arith.constant 0 : index
      %c0_40 = arith.constant 0 : index
      %c0_41 = arith.constant 0 : index
      %c0_42 = arith.constant 0 : index
      %c0_43 = arith.constant 0 : index
      %72 = vector.load %arg4[%c0_39, %c0_40, %c0_41, %c0_42, %c0_43] : memref<1x3x4x8x128xf32, #tpu.memory_space<vmem>>, vector<1x3x4x8x128xf32>
      tpu.vector_store %arg4[%c0_39, %c0_40, %c0_41, %c0_42, %c0_43], %71 {strides = array<i32>} : memref<1x3x4x8x128xf32, #tpu.memory_space<vmem>>, vector<1x3x4x8x128xf32>,
    } else {
    }
    %c0 = arith.constant 0 : index
    %c0_1 = arith.constant 0 : index
    %c0_2 = arith.constant 0 : index
    %c0_3 = arith.constant 0 : index
    %3 = vector.load %arg2[%c0, %c0_1, %c0_2, %c0_3] : memref<1x4x8x128xf32, #tpu.memory_space<vmem>>, vector<1x4x8x128xf32>
    %4 = vector.shape_cast %3 : vector<1x4x8x128xf32> to vector<4x8x128xf32>
    %c0_4 = arith.constant 0 : index
    %c0_5 = arith.constant 0 : index
    %c0_6 = arith.constant 0 : index
    %5 = vector.load %arg3[%c0_4, %c0_5, %c0_6] : memref<1x8x128xi32, #tpu.memory_space<vmem>>, vector<1x8x128xi32>
    %6 = vector.shape_cast %5 : vector<1x8x128xi32> to vector<8x128xi32>
    %7 = vector.extract_strided_slice %4 {offsets = [0, 0, 0], sizes = [1, 8, 128], strides = [1, 1, 1]} : vector<4x8x128xf32> to vector<1x8x128xf32>
    %8 = vector.shape_cast %7 : vector<1x8x128xf32> to vector<8x128xf32>
    %9 = vector.extract_strided_slice %4 {offsets = [1, 0, 0], sizes = [1, 8, 128], strides = [1, 1, 1]} : vector<4x8x128xf32> to vector<1x8x128xf32>
    %10 = vector.shape_cast %9 : vector<1x8x128xf32> to vector<8x128xf32>
    %11 = arith.maximumf %8, %10 : vector<8x128xf32>
    %12 = vector.extract_strided_slice %4 {offsets = [2, 0, 0], sizes = [1, 8, 128], strides = [1, 1, 1]} : vector<4x8x128xf32> to vector<1x8x128xf32>
    %13 = vector.shape_cast %12 : vector<1x8x128xf32> to vector<8x128xf32>
    %14 = arith.maximumf %11, %13 : vector<8x128xf32>
    %15 = vector.extract_strided_slice %4 {offsets = [3, 0, 0], sizes = [1, 8, 128], strides = [1, 1, 1]} : vector<4x8x128xf32> to vector<1x8x128xf32>
    %16 = vector.shape_cast %15 : vector<1x8x128xf32> to vector<8x128xf32>
    %17 = arith.maximumf %14, %16 : vector<8x128xf32>
    %18 = vector.shape_cast %17 : vector<8x128xf32> to vector<1x8x128xf32>
    %19 = vector.broadcast %18 : vector<1x8x128xf32> to vector<4x8x128xf32>
    %20 = arith.subf %4, %19 : vector<4x8x128xf32>
    %21 = math.exp %20 : vector<4x8x128xf32>
    %22 = vector.extract_strided_slice %21 {offsets = [0, 0, 0], sizes = [1, 8, 128], strides = [1, 1, 1]} : vector<4x8x128xf32> to vector<1x8x128xf32>
    %23 = vector.shape_cast %22 : vector<1x8x128xf32> to vector<8x128xf32>
    %24 = vector.extract_strided_slice %21 {offsets = [1, 0, 0], sizes = [1, 8, 128], strides = [1, 1, 1]} : vector<4x8x128xf32> to vector<1x8x128xf32>
    %25 = vector.shape_cast %24 : vector<1x8x128xf32> to vector<8x128xf32>
    %26 = arith.addf %23, %25 : vector<8x128xf32>
    %27 = vector.extract_strided_slice %21 {offsets = [2, 0, 0], sizes = [1, 8, 128], strides = [1, 1, 1]} : vector<4x8x128xf32> to vector<1x8x128xf32>
    %28 = vector.shape_cast %27 : vector<1x8x128xf32> to vector<8x128xf32>
    %29 = arith.addf %26, %28 : vector<8x128xf32>
    %30 = vector.extract_strided_slice %21 {offsets = [3, 0, 0], sizes = [1, 8, 128], strides = [1, 1, 1]} : vector<4x8x128xf32> to vector<1x8x128xf32>
    %31 = vector.shape_cast %30 : vector<1x8x128xf32> to vector<8x128xf32>
    %32 = arith.addf %29, %31 : vector<8x128xf32>
    %33 = tpu.reciprocal %32 : vector<8x128xf32> -> vector<8x128xf32>
    %34 = vector.shape_cast %33 : vector<8x128xf32> to vector<1x8x128xf32>
    %35 = vector.broadcast %34 : vector<1x8x128xf32> to vector<4x8x128xf32>
    %36 = arith.mulf %21, %35 : vector<4x8x128xf32>
    %37 = tpu.iota {dimensions = array<i32: 0>} : vector<4x8x128xi32>
    %38 = vector.shape_cast %6 : vector<8x128xi32> to vector<1x8x128xi32>
    %39 = vector.broadcast %38 : vector<1x8x128xi32> to vector<4x8x128xi32>
    %40 = arith.cmpi eq, %37, %39 : vector<4x8x128xi32>
    %cst = arith.constant 0.000000e+00 : f32
    %41 = vector.broadcast %cst : f32 to vector<4x8x128xf32>
    %42 = arith.select %40, %36, %41 : vector<4x8x128xi1>, vector<4x8x128xf32>
    %cst_7 = arith.constant 1.000000e+00 : f32
    %cst_8 = arith.constant 0.000000e+00 : f32
    %43 = vector.broadcast %cst_7 : f32 to vector<4x8x128xf32>
    %44 = vector.broadcast %cst_8 : f32 to vector<4x8x128xf32>
    %45 = arith.select %40, %43, %44 : vector<4x8x128xi1>, vector<4x8x128xf32>
    %c4_i32 = arith.constant 4 : i32
    %46 = vector.broadcast %c4_i32 : i32 to vector<8x128xi32>
    %47 = arith.cmpi slt, %6, %46 : vector<8x128xi32>
    %48 = vector.shape_cast %47 : vector<8x128xi1> to vector<1x8x128xi1>
    %cst_9 = arith.constant 0.000000e+00 : f32
    %49 = vector.shape_cast %48 : vector<1x8x128xi1> to vector<1x8x128xi1>
    %50 = vector.broadcast %49 : vector<1x8x128xi1> to vector<4x8x128xi1>
    %51 = vector.broadcast %cst_9 : f32 to vector<4x8x128xf32>
    %52 = arith.select %50, %36, %51 : vector<4x8x128xi1>, vector<4x8x128xf32>
    %c0_10 = arith.constant 0 : index
    %c0_11 = arith.constant 0 : index
    %c0_12 = arith.constant 0 : index
    %c0_13 = arith.constant 0 : index
    %c0_14 = arith.constant 0 : index
    %53 = vector.load %arg4[%c0_10, %c0_11, %c0_12, %c0_13, %c0_14] : memref<1x3x4x8x128xf32, #tpu.memory_space<vmem>>, vector<1x1x4x8x128xf32>
    %54 = vector.shape_cast %53 : vector<1x1x4x8x128xf32> to vector<4x8x128xf32>
    %55 = arith.addf %54, %42 : vector<4x8x128xf32>
    %c0_15 = arith.constant 0 : index
    %c0_16 = arith.constant 0 : index
    %c0_17 = arith.constant 0 : index
    %c0_18 = arith.constant 0 : index
    %c0_19 = arith.constant 0 : index
    %56 = vector.load %arg4[%c0_15, %c0_16, %c0_17, %c0_18, %c0_19] : memref<1x3x4x8x128xf32, #tpu.memory_space<vmem>>, vector<1x1x4x8x128xf32>
    %57 = vector.shape_cast %56 : vector<1x1x4x8x128xf32> to vector<4x8x128xf32>
    %58 = vector.shape_cast %55 : vector<4x8x128xf32> to vector<1x1x4x8x128xf32>
    tpu.vector_store %arg4[%c0_15, %c0_16, %c0_17, %c0_18, %c0_19], %58 {strides = array<i32>} : memref<1x3x4x8x128xf32, #tpu.memory_space<vmem>>, vector<1x1x4x8x128xf32>,
    %c0_20 = arith.constant 0 : index
    %c1 = arith.constant 1 : index
    %c0_21 = arith.constant 0 : index
    %c0_22 = arith.constant 0 : index
    %c0_23 = arith.constant 0 : index
    %59 = vector.load %arg4[%c0_20, %c1, %c0_21, %c0_22, %c0_23] : memref<1x3x4x8x128xf32, #tpu.memory_space<vmem>>, vector<1x1x4x8x128xf32>
    %60 = vector.shape_cast %59 : vector<1x1x4x8x128xf32> to vector<4x8x128xf32>
    %61 = arith.addf %60, %45 : vector<4x8x128xf32>
    %c0_24 = arith.constant 0 : index
    %c1_25 = arith.constant 1 : index
    %c0_26 = arith.constant 0 : index
    %c0_27 = arith.constant 0 : index
    %c0_28 = arith.constant 0 : index
    %62 = vector.load %arg4[%c0_24, %c1_25, %c0_26, %c0_27, %c0_28] : memref<1x3x4x8x128xf32, #tpu.memory_space<vmem>>, vector<1x1x4x8x128xf32>
    %63 = vector.shape_cast %62 : vector<1x1x4x8x128xf32> to vector<4x8x128xf32>
    %64 = vector.shape_cast %61 : vector<4x8x128xf32> to vector<1x1x4x8x128xf32>
    tpu.vector_store %arg4[%c0_24, %c1_25, %c0_26, %c0_27, %c0_28], %64 {strides = array<i32>} : memref<1x3x4x8x128xf32, #tpu.memory_space<vmem>>, vector<1x1x4x8x128xf32>,
    %c0_29 = arith.constant 0 : index
    %c2 = arith.constant 2 : index
    %c0_30 = arith.constant 0 : index
    %c0_31 = arith.constant 0 : index
    %c0_32 = arith.constant 0 : index
    %65 = vector.load %arg4[%c0_29, %c2, %c0_30, %c0_31, %c0_32] : memref<1x3x4x8x128xf32, #tpu.memory_space<vmem>>, vector<1x1x4x8x128xf32>
    %66 = vector.shape_cast %65 : vector<1x1x4x8x128xf32> to vector<4x8x128xf32>
    %67 = arith.addf %66, %52 : vector<4x8x128xf32>
    %c0_33 = arith.constant 0 : index
    %c2_34 = arith.constant 2 : index
    %c0_35 = arith.constant 0 : index
    %c0_36 = arith.constant 0 : index
    %c0_37 = arith.constant 0 : index
    %68 = vector.load %arg4[%c0_33, %c2_34, %c0_35, %c0_36, %c0_37] : memref<1x3x4x8x128xf32, #tpu.memory_space<vmem>>, vector<1x1x4x8x128xf32>
    %69 = vector.shape_cast %68 : vector<1x1x4x8x128xf32> to vector<4x8x128xf32>
    %70 = vector.shape_cast %67 : vector<4x8x128xf32> to vector<1x1x4x8x128xf32>
    tpu.vector_store %arg4[%c0_33, %c2_34, %c0_35, %c0_36, %c0_37], %70 {strides = array<i32>} : memref<1x3x4x8x128xf32, #tpu.memory_space<vmem>>, vector<1x1x4x8x128xf32>,
    return
  }
  func.func @transform_0(%arg0: i32, %arg1: i32) -> (i32, i32, i32, i32) {
    %c0_i32 = arith.constant 0 : i32
    %c0_i32_0 = arith.constant 0 : i32
    %c0_i32_1 = arith.constant 0 : i32
    return %arg0, %c0_i32, %arg1, %c0_i32_0 : i32, i32, i32, i32
  }
  func.func @transform_1(%arg0: i32, %arg1: i32) -> (i32, i32, i32) {
    %c0_i32 = arith.constant 0 : i32
    %c0_i32_0 = arith.constant 0 : i32
    return %arg0, %arg1, %c0_i32 : i32, i32, i32
  }
  func.func @transform_2(%arg0: i32, %arg1: i32) -> (i32, i32, i32, i32, i32) {
    %c0_i32 = arith.constant 0 : i32
    %c0_i32_0 = arith.constant 0 : i32
    %c0_i32_1 = arith.constant 0 : i32
    %c0_i32_2 = arith.constant 0 : i32
    %c0_i32_3 = arith.constant 0 : i32
    return %arg0, %c0_i32, %c0_i32_0, %c0_i32_1, %c0_i32_2 : i32, i32, i32, i32, i32
  }
}

</mosaic_0001>

<llo_original>
// kernel: dice_loss.1
$region0: #{dice_loss.1}
  #allocation0 [shape = 'u32[]', space=smem, size = 0x4, offset = 0x4, fixed_abs, tag = 'smem constant byte address 0x4 - core index']
  #allocation1 [shape = 'u32[72,128]{1,0:T(1,128)}', space=vmem, size = 0x9000, scoped, tag = 'internal scratch']
  %s0 = inlined_call_operand.vmem [shape: f32[2,4,8,128], index: 0, kind: input, shape index: {}]
  %s1 = inlined_call_operand.vmem [shape: s32[2,8,128], index: 1, kind: input, shape index: {}]
  %s2 = inlined_call_operand.vmem [shape: f32[2,3,4,8,128], index: 2, kind: output, shape index: {}]
  %s3 = sld [smem:[#allocation0]]
  $region45: #{dice_loss.1} parent=0
    _
  %s5 = ssub.s32 1, %s3
  %s6 = scalar_select 0, %s5, %s3
  loop: start=0, step=1, limit=4
  $region2: #{dice_loss.1} parent=0 // loop_pre_header
    _
  $region3: #{dice_loss.1} parent=0 // loop_header
    %s8 = sphi 0, %s12
    %p9 = scmp.ge.s32.totalorder %s8, 4
    %s15 = sphi 0, %s27
    %s16 = sphi 0, %s23
    %s17 = sphi 0, %s15
    %s18 = sphi 0, %s16
    %s19 = sphi 0, %s17
    %s20 = sphi 0, %s18
    %s32 = sphi 0, %s34
    %s35 = sphi 0, %s32
    %s36 = sphi 0, %s35
    %s52 = sphi 0, %s36
    %s60 = sphi 0, %s62
    %s63 = sphi 0, %s60
    %s64 = sphi 0, %s63
    %s80 = sphi 0, %s64
    %s86 = sphi 0, %s88
    %s89 = sphi 0, %s86
    %s90 = sphi 0, %s89
    %s106 = sphi 0, %s90
  $region4: #{dice_loss.1} parent=0 // loop_header_branch
    %11 = sbr.rel (%p9) target = $region8
  $region5: #{dice_loss.1} parent=0 // loop_body
    %s13 = ssub.s32 %s8, 1
    %s14 = ssub.s32 %s8, 2
    %s21 = sadd.s32 1, %s16
    %p22 = scmp.ge.s32.totalorder %s21, 1
    %s23 = scalar_select %p22, 0, %s21
    %s24 = sadd.s32 1, %s15
    %s25 = scalar_select %p22, %s24, %s15
    %p26 = scmp.ge.s32.totalorder %s25, 2
    %s27 = scalar_select %p26, 0, %s25
    %s28 = ssub.s32 %s15, %s27
    %s29 = ssub.s32 %s16, %s23
    %s30 = sor.u32 %s28, %s29
    %p31 = scmp.eq.s32.totalorder %s30, 0
    %s33 = sadd.s32 %s32, 1
    %s34 = scalar_select %p31, %s32, %s33
    %p37 = pneg %p31
    %p38 = scmp.eq.s32.totalorder %s8, 1
    %p39 = por %p37, %p38
    %p40 = scmp.ne.s32.totalorder %s32, %s35
    %p41 = scmp.eq.s32.totalorder %s8, 0
    %p42 = por %p40, %p41
    %p43 = scmp.ne.s32.totalorder %s32, %s35
    %p44 = scmp.eq.s32.totalorder %s13, 1
    %p45 = por %p43, %p44
    %p46 = scmp.ne.s32.totalorder %s35, %s36
    %p47 = scmp.eq.s32.totalorder %s13, 0
    %p48 = por %p46, %p47
    %p49 = scmp.ne.s32.totalorder %s35, %s36
    %p50 = scmp.eq.s32.totalorder %s14, 1
    %p51 = por %p49, %p50
    %p53 = scmp.ne.s32.totalorder %s36, %s52
    %p54 = scmp.eq.s32.totalorder %s14, 0
    %p55 = por %p53, %p54
    %s56 = ssub.s32 %s15, %s27
    %s57 = ssub.s32 %s16, %s23
    %s58 = sor.u32 %s56, %s57
    %p59 = scmp.eq.s32.totalorder %s58, 0
    %s61 = sadd.s32 %s60, 1
    %s62 = scalar_select %p59, %s60, %s61
    %p65 = pneg %p59
    %p66 = scmp.eq.s32.totalorder %s8, 1
    %p67 = por %p65, %p66
    %p68 = scmp.ne.s32.totalorder %s60, %s63
    %p69 = scmp.eq.s32.totalorder %s8, 0
    %p70 = por %p68, %p69
    %p71 = scmp.ne.s32.totalorder %s60, %s63
    %p72 = scmp.eq.s32.totalorder %s13, 1
    %p73 = por %p71, %p72
    %p74 = scmp.ne.s32.totalorder %s63, %s64
    %p75 = scmp.eq.s32.totalorder %s13, 0
    %p76 = por %p74, %p75
    %p77 = scmp.ne.s32.totalorder %s63, %s64
    %p78 = scmp.eq.s32.totalorder %s14, 1
    %p79 = por %p77, %p78
    %p81 = scmp.ne.s32.totalorder %s64, %s80
    %p82 = scmp.eq.s32.totalorder %s14, 0
    %p83 = por %p81, %p82
    %s84 = ssub.s32 %s15, %s27
    %p85 = scmp.eq.s32.totalorder %s84, 0
    %s87 = sadd.s32 %s86, 1
    %s88 = scalar_select %p85, %s86, %s87
    %p91 = pneg %p85
    %p92 = scmp.eq.s32.totalorder %s8, 1
    %p93 = por %p91, %p92
    %p94 = scmp.ne.s32.totalorder %s86, %s89
    %p95 = scmp.eq.s32.totalorder %s8, 0
    %p96 = por %p94, %p95
    %p97 = scmp.ne.s32.totalorder %s86, %s89
    %p98 = scmp.eq.s32.totalorder %s13, 1
    %p99 = por %p97, %p98
    %p100 = scmp.ne.s32.totalorder %s89, %s90
    %p101 = scmp.eq.s32.totalorder %s13, 0
    %p102 = por %p100, %p101
    %p103 = scmp.ne.s32.totalorder %s89, %s90
    %p104 = scmp.eq.s32.totalorder %s14, 1
    %p105 = por %p103, %p104
    %p107 = scmp.ne.s32.totalorder %s90, %s106
    %p108 = scmp.eq.s32.totalorder %s14, 0
    %p109 = por %p107, %p108
    %p110 = scmp.le.s32.totalorder 1, %s8
    %p111 = scmp.lt.s32.totalorder %s8, 3
    %p112 = pnand %p110, %p111
    %p113 = pneg %p112
    // Predicated region
    $region9: #{dice_loss.1} parent=5 // pred_check
      _
    $region10: #{dice_loss.1} parent=5 // pred_check_branch
      %115 = sbr.rel (%p112) target = $region12
    $region11: #{dice_loss.1} parent=5 // pred_region
      %s116 = ssub.s32 %s8, 1
    $region12: #{dice_loss.1} parent=5 // pred_fallthru
      _
    %p117 = scmp.lt.s32.totalorder %s8, 2
    // Predicated region
    $region13: #{dice_loss.1} parent=5 // pred_check
      %p118 = pneg %p117
    $region14: #{dice_loss.1} parent=5 // pred_check_branch
      %120 = sbr.rel (%p118) target = $region16
    $region15: #{dice_loss.1} parent=5 // pred_region
      // Predicated region
      $region17: #{dice_loss.1} parent=15 // pred_check
        %p121 = pneg %p42
      $region18: #{dice_loss.1} parent=15 // pred_check_branch
        %123 = sbr.rel (%p121) target = $region20
      $region19: #{dice_loss.1} parent=15 // pred_region
        %p124 = scmp.lt.s32.totalorder %s15, 1
        %s125 = scalar_select %p124, %s15, 1
        %p126 = scmp.lt.s32.totalorder %s16, 0
        %s127 = scalar_select %p126, %s16, 0
        %s128 = smul.addr %s125, 4
        %s129 = sadd.s32 %s127, %s128
        %s130 = smul.addr %s129, 8
        %s131 = scalar_lea.vmem %s0, %s130
      $region20: #{dice_loss.1} parent=15 // pred_fallthru
        _
      // Predicated region
      $region21: #{dice_loss.1} parent=15 // pred_check
        %p132 = pneg %p70
      $region22: #{dice_loss.1} parent=15 // pred_check_branch
        %134 = sbr.rel (%p132) target = $region24
      $region23: #{dice_loss.1} parent=15 // pred_region
        %p135 = scmp.lt.s32.totalorder %s15, 1
        %s136 = scalar_select %p135, %s15, 1
        %p137 = scmp.lt.s32.totalorder %s16, 0
        %s138 = scalar_select %p137, %s16, 0
        %s139 = sadd.s32 %s138, %s136
        %s140 = smul.addr %s139, 8
        %s141 = scalar_lea.vmem %s1, %s140
      $region24: #{dice_loss.1} parent=15 // pred_fallthru
        _
    $region16: #{dice_loss.1} parent=5 // pred_fallthru
      _
    %p142 = scmp.le.s32.totalorder 1, %s8
    %p143 = scmp.lt.s32.totalorder %s8, 3
    %p144 = pnand %p142, %p143
    %p145 = pneg %p144
    // Predicated region
    $region25: #{dice_loss.1} parent=5 // pred_check
      _
    $region26: #{dice_loss.1} parent=5 // pred_check_branch
      %147 = sbr.rel (%p144) target = $region28
    $region27: #{dice_loss.1} parent=5 // pred_region
      %s148 = ssub.s32 %s8, 1
      %p149 = scmp.lt.s32.totalorder %s17, 1
      %s150 = scalar_select %p149, %s17, 1
      %p151 = scmp.lt.s32.totalorder %s18, 0
      %s152 = scalar_select %p151, %s18, 0
      %s153 = smul.addr %s150, 4
      %s154 = sadd.s32 %s152, %s153
      %s155 = smul.addr %s154, 8
      %s156 = scalar_lea.vmem %s0, %s155
      %p157 = pneg %p48
      %p158 = pneg %p45
      %p159 = scmp.lt.s32.totalorder %s17, 1
      %s160 = scalar_select %p159, %s17, 1
      %p161 = scmp.lt.s32.totalorder %s18, 0
      %s162 = scalar_select %p161, %s18, 0
      %s163 = sadd.s32 %s162, %s160
      %s164 = smul.addr %s163, 8
      %s165 = scalar_lea.vmem %s1, %s164
      %p166 = pneg %p76
      %p167 = pneg %p73
      %p168 = pneg %p102
      %p169 = pneg %p99
      %p170 = scmp.lt.s32.totalorder %s17, 1
      %s171 = scalar_select %p170, %s17, 1
      %s172 = smul.addr %s171, 12
      %s173 = smul.addr %s172, 8
      %s174 = scalar_lea.vmem %s2, %s173
      %p175 = scmp.lt.s32.totalorder %s17, 1
      %s176 = scalar_select %p175, %s17, 1
      %p177 = scmp.lt.s32.totalorder %s18, 0
      %s178 = scalar_select %p177, %s18, 0
      %s179 = smul.addr %s176, 4
      %s180 = sadd.s32 %s178, %s179
      %s181 = smul.addr %s180, 8
      %s182 = scalar_lea.vmem %s0, %s181
      %p183 = scmp.lt.s32.totalorder %s17, 1
      %s184 = scalar_select %p183, %s17, 1
      %p185 = scmp.lt.s32.totalorder %s18, 0
      %s186 = scalar_select %p185, %s18, 0
      %s187 = sadd.s32 %s186, %s184
      %s188 = smul.addr %s187, 8
      %s189 = scalar_lea.vmem %s1, %s188
      %p190 = scmp.lt.s32.totalorder %s17, 1
      %s191 = scalar_select %p190, %s17, 1
      %s192 = smul.addr %s191, 12
      %s193 = smul.addr %s192, 8
      %s194 = scalar_lea.vmem %s2, %s193
      %p195 = scmp.eq.s32.totalorder %s18, 0
      // Predicated region
      $region29: #{dice_loss.1} parent=27 // pred_check
        %p196 = pneg %p195
      $region30: #{dice_loss.1} parent=27 // pred_check_branch
        %198 = sbr.rel (%p196) target = $region32
      $region31: #{dice_loss.1} parent=27 // pred_region
        %199 = vst [vmem:[%s194] sm:$0xff] 0.0
        %200 = vst [vmem:[%s194 + $0x8] sm:$0xff] 0.0
        %201 = vst [vmem:[%s194 + $0x10] sm:$0xff] 0.0
        %202 = vst [vmem:[%s194 + $0x18] sm:$0xff] 0.0
        %203 = vst [vmem:[%s194 + $0x20] sm:$0xff] 0.0
        %204 = vst [vmem:[%s194 + $0x28] sm:$0xff] 0.0
        %205 = vst [vmem:[%s194 + $0x30] sm:$0xff] 0.0
        %206 = vst [vmem:[%s194 + $0x38] sm:$0xff] 0.0
        %207 = vst [vmem:[%s194 + $0x40] sm:$0xff] 0.0
        %208 = vst [vmem:[%s194 + $0x48] sm:$0xff] 0.0
        %209 = vst [vmem:[%s194 + $0x50] sm:$0xff] 0.0
        %210 = vst [vmem:[%s194 + $0x58] sm:$0xff] 0.0
      $region32: #{dice_loss.1} parent=27 // pred_fallthru
        _
      %v211 = vld [vmem:[%s182] sm:$0xff]
      %v212 = vld [vmem:[%s182 + $0x8] sm:$0xff]
      %v213 = vld [vmem:[%s182 + $0x10] sm:$0xff]
      %v214 = vld [vmem:[%s182 + $0x18] sm:$0xff]
      %v215 = vld [vmem:[%s189] sm:$0xff]
      %v216 = vmax.f32 %v211, %v212
      %v217 = vmax.f32 %v216, %v213
      %v218 = vmax.f32 %v217, %v214
      %v219 = vsub.f32 %v211, %v218
      %v220 = vsub.f32 %v212, %v218
      %v221 = vsub.f32 %v213, %v218
      %v222 = vsub.f32 %v214, %v218
      %v223 = vmul.f32 %v219, 1.442695
      %v224 = vpow.pop %v223
      %v225 = vmul.f32 %v220, 1.442695
      %v226 = vpow.pop %v225
      %v227 = vmul.f32 %v221, 1.442695
      %v228 = vpow.pop %v227
      %v229 = vmul.f32 %v222, 1.442695
      %v230 = vpow.pop %v229
      %v231 = vadd.f32 %v224, %v226
      %v232 = vadd.f32 %v231, %v228
      %v233 = vadd.f32 %v232, %v230
      %v234 = vrcp.pop %v233
      %v235 = vmul.f32 %v233, %v234
      %v236 = vsub.f32 1.0, %v235
      %v237 = vmul.f32 %v234, %v236
      %v238 = vadd.f32 %v234, %v237
      %vm239 = vweird.f32 %v233
      %vm240 = vweird.f32 %v234
      %vm241 = vmor %vm239, %vm240
      %v242 = vsel %vm241, %v234, %v238
      %v243 = vand.u32 2147483647, %v233
      %vm244 = vcmp.eq.f32.partialorder %v243, 8.507059e+37
      %v245 = vand.u32 %v233, 2147483648
      %v246 = vor.u32 1.1754944e-38, %v245
      %v247 = vsel %vm244, %v246, %v242
      %v248 = vmul.f32 %v224, %v247
      %v249 = vmul.f32 %v226, %v247
      %v250 = vmul.f32 %v228, %v247
      %v251 = vmul.f32 %v230, %v247
      %vm252 = vcmp.eq.s32.totalorder %v215, 0
      %vm253 = vcmp.eq.s32.totalorder %v215, 1
      %vm254 = vcmp.eq.s32.totalorder %v215, 2
      %vm255 = vcmp.eq.s32.totalorder %v215, 3
      %v256 = vsel %vm252, %v248, 0.0
      %v257 = vsel %vm253, %v249, 0.0
      %v258 = vsel %vm254, %v250, 0.0
      %v259 = vsel %vm255, %v251, 0.0
      %v260 = vsel %vm252, 1.0, 0.0
      %v261 = vsel %vm253, 1.0, 0.0
      %v262 = vsel %vm254, 1.0, 0.0
      %v263 = vsel %vm255, 1.0, 0.0
      %vm264 = vcmp.lt.s32.totalorder %v215, 4
      %v265 = vsel %vm264, 1, 0
      %vm266 = vcmp.eq.s32.totalorder %v265, 1
      %v267 = vsel %vm266, %v248, 0.0
      %v268 = vsel %vm266, %v249, 0.0
      %v269 = vsel %vm266, %v250, 0.0
      %v270 = vsel %vm266, %v251, 0.0
      %v271 = vld [vmem:[%s194] sm:$0xff]
      %v272 = vld [vmem:[%s194 + $0x8] sm:$0xff]
      %v273 = vld [vmem:[%s194 + $0x10] sm:$0xff]
      %v274 = vld [vmem:[%s194 + $0x18] sm:$0xff]
      %v275 = vadd.f32 %v271, %v256
      %v276 = vadd.f32 %v272, %v257
      %v277 = vadd.f32 %v273, %v258
      %v278 = vadd.f32 %v274, %v259
      %279 = vst [vmem:[%s194] sm:$0xff] %v275
      %280 = vst [vmem:[%s194 + $0x8] sm:$0xff] %v276
      %281 = vst [vmem:[%s194 + $0x10] sm:$0xff] %v277
      %282 = vst [vmem:[%s194 + $0x18] sm:$0xff] %v278
      %s283 = scalar_lea.vmem %s194, 32
      %v284 = vld [vmem:[%s283] sm:$0xff]
      %v285 = vld [vmem:[%s283 + $0x8] sm:$0xff]
      %v286 = vld [vmem:[%s283 + $0x10] sm:$0xff]
      %v287 = vld [vmem:[%s283 + $0x18] sm:$0xff]
      %v288 = vadd.f32 %v284, %v260
      %v289 = vadd.f32 %v285, %v261
      %v290 = vadd.f32 %v286, %v262
      %v291 = vadd.f32 %v287, %v263
      %292 = vst [vmem:[%s283] sm:$0xff] %v288
      %293 = vst [vmem:[%s283 + $0x8] sm:$0xff] %v289
      %294 = vst [vmem:[%s283 + $0x10] sm:$0xff] %v290
      %295 = vst [vmem:[%s283 + $0x18] sm:$0xff] %v291
      %s296 = scalar_lea.vmem %s194, 64
      %v297 = vld [vmem:[%s296] sm:$0xff]
      %v298 = vld [vmem:[%s296 + $0x8] sm:$0xff]
      %v299 = vld [vmem:[%s296 + $0x10] sm:$0xff]
      %v300 = vld [vmem:[%s296 + $0x18] sm:$0xff]
      %v301 = vadd.f32 %v297, %v267
      %v302 = vadd.f32 %v298, %v268
      %v303 = vadd.f32 %v299, %v269
      %v304 = vadd.f32 %v300, %v270
      %305 = vst [vmem:[%s296] sm:$0xff] %v301
      %306 = vst [vmem:[%s296 + $0x8] sm:$0xff] %v302
      %307 = vst [vmem:[%s296 + $0x10] sm:$0xff] %v303
      %308 = vst [vmem:[%s296 + $0x18] sm:$0xff] %v304
      %p309 = scmp.lt.s32.totalorder %s17, 1
      %s310 = scalar_select %p309, %s17, 1
      %s311 = smul.addr %s310, 12
      %s312 = smul.addr %s311, 8
      %s313 = scalar_lea.vmem %s2, %s312
      // Predicated region
      $region33: #{dice_loss.1} parent=27 // pred_check
        %p314 = pneg %p99
      $region34: #{dice_loss.1} parent=27 // pred_check_branch
        %316 = sbr.rel (%p314) target = $region36
      $region35: #{dice_loss.1} parent=27 // pred_region
        _
      $region36: #{dice_loss.1} parent=27 // pred_fallthru
        _
    $region28: #{dice_loss.1} parent=5 // pred_fallthru
      _
    %p317 = scmp.le.s32.totalorder 2, %s8
    // Predicated region
    $region37: #{dice_loss.1} parent=5 // pred_check
      %p318 = pneg %p317
    $region38: #{dice_loss.1} parent=5 // pred_check_branch
      %320 = sbr.rel (%p318) target = $region40
    $region39: #{dice_loss.1} parent=5 // pred_region
      %s321 = ssub.s32 %s8, 2
      // Predicated region
      $region41: #{dice_loss.1} parent=39 // pred_check
        %p322 = pneg %p105
      $region42: #{dice_loss.1} parent=39 // pred_check_branch
        %324 = sbr.rel (%p322) target = $region44
      $region43: #{dice_loss.1} parent=39 // pred_region
        %p325 = scmp.lt.s32.totalorder %s19, 1
        %s326 = scalar_select %p325, %s19, 1
        %s327 = smul.addr %s326, 12
        %s328 = smul.addr %s327, 8
        %s329 = scalar_lea.vmem %s2, %s328
      $region44: #{dice_loss.1} parent=39 // pred_fallthru
        _
    $region40: #{dice_loss.1} parent=5 // pred_fallthru
      _
  $region6: #{dice_loss.1} parent=0 // loop_footer
    %s12 = sadd.s32 1, %s8
  $region7: #{dice_loss.1} parent=0 // loop_footer_branch
    %7 = sbr.rel target = $region3
  $region8: #{dice_loss.1} parent=0 // loop_exit
    _

</llo_original>
